<compile_context>
chip_gen: v7x
topology: tpu7x:2x2x1
jax: 0.10.0
libtpu: 0.0.40
codegen_flags: <defaults>
</compile_context>

<pallas_src>
import jax
import jax.numpy as jnp
from jax.experimental import pallas as pl
from jax.experimental.pallas import tpu as pltpu


def _round_up(n, m):
    return ((n + m - 1) // m) * m


def _choose_tile(batch, max_tile):
    """Pick (tile_b, num_tiles) for the batch axis.

    Small batches: one tile, rounded up to a sublane multiple of 8.
    Large batches: at least 2 tiles (both v7x TensorCores get work), tile
    width a multiple of 128 so every non-final output block store stays an
    unmasked lane-dense vst.
    """
    if batch <= min(1024, max(max_tile, 8)):
        return _round_up(batch, 8), 1
    max_tile_aligned = max(128, (max_tile // 128) * 128)
    tile_b = min(max_tile_aligned, _round_up(pl.cdiv(batch, 2), 128))
    return tile_b, pl.cdiv(batch, tile_b)


def mlp_regressor_kernel(x_ref, w1_ref, b1_ref, w2_ref, b2_ref, o_ref):
    # x : (TB, D) caller dtype | w1: (D, H) compute dtype | b1, w2: (1, H) f32
    # b2: (1,) f32 in SMEM     | o : (1, TB) f32 (lane-dense: batch on lanes)
    x = x_ref[...].astype(w1_ref.dtype)  # VPU cast -> single-pass MXU matmul
    h = jnp.dot(x, w1_ref[...], preferred_element_type=jnp.float32)   # (TB, H)
    h = jnp.maximum(h + b1_ref[...], 0.0)
    # fc2 (H -> 1): VPU multiply + XLU lane reduction; no 1-wide MXU matmul.
    out = jnp.sum(h * w2_ref[...], axis=-1) + b2_ref[0]               # (TB,)
    # Lane-dense store: batch sits on the lane axis -> unmasked vst.
    o_ref[...] = out[None, :].astype(o_ref.dtype)


def mlp_regressor(x, w1, b1, w2, b2, *, tile_b=4096, compute_dtype=jnp.bfloat16):
    """Fused fc1 -> ReLU -> fc2 forward.

    x : (B, D) float32 or bfloat16
    w1: (D, H), b1: (H,)   fc1 weight (pre-transposed vs nn.Linear) / bias
    w2: (H, 1), b2: (1,)   fc2 weight (pre-transposed vs nn.Linear) / bias
    returns (B, 1) float32
    """
    B, D = x.shape
    H = w1.shape[1]

    tile_b, num_tiles = _choose_tile(B, tile_b)
    slab = num_tiles * tile_b           # padded lane-dense output width (>= B)

    w1_c = w1.astype(compute_dtype)     # tiny (D*H), cast once, DMA'd once
    b1_2d = b1.reshape(1, H).astype(jnp.float32)    # lane-aligned bias row
    w2_row = w2.reshape(1, H).astype(jnp.float32)   # fc2 weight as a row vector
    b2_s = b2.astype(jnp.float32)

    flops = 2 * B * H * (D + 1)
    bytes_accessed = (B * D * x.dtype.itemsize          # x stream
                      + D * H * w1_c.dtype.itemsize     # resident weights
                      + 2 * H * 4 + 4                   # b1, w2, b2
                      + B * 4)                          # output

    out_slab = pl.pallas_call(
        mlp_regressor_kernel,
        grid=(num_tiles,),
        in_specs=[
            # x streams one batch tile per grid step (double-buffered);
            # the ragged last block (B not a multiple of tile_b) is handled
            # by Pallas -- garbage rows only reach the sliced-off slab tail.
            pl.BlockSpec((tile_b, D), lambda i: (i, 0)),
            # Weights / bias: constant block index -> DMA'd once, VMEM-resident.
            pl.BlockSpec((D, H), lambda i: (0, 0)),
            pl.BlockSpec((1, H), lambda i: (0, 0)),
            pl.BlockSpec((1, H), lambda i: (0, 0)),
            # b2 scalar in SMEM (no (8,128) VMEM tile padding / extra DMA tile).
            pl.BlockSpec(memory_space=pltpu.MemorySpace.SMEM),
        ],
        # Lane-dense output slab (1, slab): batch on lanes -> unmasked stores.
        out_specs=pl.BlockSpec((1, tile_b), lambda i: (0, i)),
        out_shape=jax.ShapeDtypeStruct((1, slab), jnp.float32),
        compiler_params=pltpu.CompilerParams(
            # Batch axis is independent per tile; if xprof ever shows one v7x
            # TC idle, switch to pltpu.CORE_PARALLEL here.
            dimension_semantics=("parallel",),
            vmem_limit_bytes=32 * 1024 * 1024),
        cost_estimate=pl.CostEstimate(flops=flops, transcendentals=0,
                                      bytes_accessed=bytes_accessed),
    )(x, w1_c, b1_2d, w2_row, b2_s)

    # Layout plumbing back to the module's (B, 1) output shape.
    return out_slab[0, :B].reshape(B, 1)


if __name__ == "__main__":
    # Shapes consistent with the module: params.latent_dim = 32, hidden = 128.
    D, H = 32, 128

    key = jax.random.PRNGKey(0)
    k_x, k_w1, k_b1, k_w2, k_b2, k_x2, k_x3 = jax.random.split(key, 7)

    # Deterministic init mimicking nn.Linear's uniform(-1/sqrt(fan_in), +).
    lim1 = 1.0 / jnp.sqrt(jnp.float32(D))
    w1 = jax.random.uniform(k_w1, (D, H), jnp.float32, -lim1, lim1)
    b1 = jax.random.uniform(k_b1, (H,), jnp.float32, -lim1, lim1)
    lim2 = 1.0 / jnp.sqrt(jnp.float32(H))
    w2 = jax.random.uniform(k_w2, (H, 1), jnp.float32, -lim2, lim2)
    b2 = jax.random.uniform(k_b2, (1,), jnp.float32, -lim2, lim2)

    def reference_f32(x):
        h = jnp.maximum(x @ w1 + b1, 0.0)
        return h @ w2 + b2

    def reference_bf16(x):
        # Matches the kernel's bf16-operand / f32-accumulate fc1 and its
        # elementwise-multiply + lane-reduce fc2.
        h = jnp.dot(x.astype(jnp.bfloat16), w1.astype(jnp.bfloat16),
                    preferred_element_type=jnp.float32)
        h = jnp.maximum(h + b1, 0.0)
        return jnp.sum(h * w2.reshape(1, H), axis=-1, keepdims=True) + b2

    # Small batch (module-sized), mid batch (single big tile), and a batch
    # that exercises multi-tile gridding with a ragged last block.
    for B, kx in ((8, k_x), (600, k_x2), (2000, k_x3)):
        x = jax.random.normal(kx, (B, D), dtype=jnp.float32)
        out = jax.block_until_ready(mlp_regressor(x, w1, b1, w2, b2))
        assert out.shape == (B, 1)
        assert jnp.allclose(out, reference_bf16(x), atol=1e-3, rtol=1e-3), B
        assert jnp.allclose(out, reference_f32(x), atol=5e-2, rtol=5e-2), B

    print("KERNEL_OK")
</pallas_src>

<mosaic_0001>
module attributes {stable_mosaic.version = 11 : i64} {
  func.func @mlp_regressor_kernel(%arg0: i32, %arg1: memref<8x32xf32, #tpu.memory_space<vmem>>, %arg2: memref<32x128xbf16, #tpu.memory_space<vmem>>, %arg3: memref<1x128xf32, #tpu.memory_space<vmem>>, %arg4: memref<1x128xf32, #tpu.memory_space<vmem>>, %arg5: memref<1xf32, #tpu.memory_space<smem>>, %arg6: memref<1x8xf32, #tpu.memory_space<vmem>>) attributes {dimension_semantics = [#tpu.dimension_semantics<parallel>], iteration_bounds = array<i64: 1>, scalar_prefetch = 0 : i64, scratch_operands = 0 : i64, tpu.core_type = #tpu.core_type<tc>, window_params = [{transform_indices = @transform_0, window_bounds = array<i64: 8, 32>}, {pipeline_mode = #tpu.pipeline_mode<synchronous>, transform_indices = @transform_1, window_bounds = array<i64: 32, 128>}, {pipeline_mode = #tpu.pipeline_mode<synchronous>, transform_indices = @transform_2, window_bounds = array<i64: 1, 128>}, {pipeline_mode = #tpu.pipeline_mode<synchronous>, transform_indices = @transform_3, window_bounds = array<i64: 1, 128>}, {transform_indices = @transform_4, window_bounds = array<i64: 1>}, {transform_indices = @transform_5, window_bounds = array<i64: 1, 8>}]} {
    %c0 = arith.constant 0 : index
    %c0_0 = arith.constant 0 : index
    %0 = vector.load %arg1[%c0, %c0_0] : memref<8x32xf32, #tpu.memory_space<vmem>>, vector<8x32xf32>
    %1 = arith.truncf %0 : vector<8x32xf32> to vector<8x32xbf16>
    %c0_1 = arith.constant 0 : index
    %c0_2 = arith.constant 0 : index
    %2 = vector.load %arg2[%c0_1, %c0_2] : memref<32x128xbf16, #tpu.memory_space<vmem>>, vector<32x128xbf16>
    %cst = arith.constant dense<0.000000e+00> : vector<8x128xf32>
    %3 = tpu.matmul %1, %2, %cst {dimension_numbers = #tpu.dot_dimension_numbers<[1], [0], [0], [1], [0, 0, 1, 1], [], []>} : vector<8x32xbf16>, vector<32x128xbf16>, vector<8x128xf32> -> vector<8x128xf32>
    %c0_3 = arith.constant 0 : index
    %c0_4 = arith.constant 0 : index
    %4 = vector.load %arg3[%c0_3, %c0_4] : memref<1x128xf32, #tpu.memory_space<vmem>>, vector<1x128xf32>
    %5 = vector.broadcast %4 : vector<1x128xf32> to vector<8x128xf32>
    %6 = arith.addf %3, %5 : vector<8x128xf32>
    %cst_5 = arith.constant 0.000000e+00 : f32
    %7 = vector.broadcast %cst_5 : f32 to vector<8x128xf32>
    %8 = arith.maximumf %6, %7 : vector<8x128xf32>
    %c0_6 = arith.constant 0 : index
    %c0_7 = arith.constant 0 : index
    %9 = vector.load %arg4[%c0_6, %c0_7] : memref<1x128xf32, #tpu.memory_space<vmem>>, vector<1x128xf32>
    %10 = vector.broadcast %9 : vector<1x128xf32> to vector<8x128xf32>
    %11 = arith.mulf %8, %10 : vector<8x128xf32>
    %cst_8 = arith.constant dense<0.000000e+00> : vector<8xf32>
    %12 = vector.multi_reduction <add>, %11, %cst_8 [1] : vector<8x128xf32> to vector<8xf32>
    %c0_9 = arith.constant 0 : index
    %13 = memref.load %arg5[%c0_9] : memref<1xf32, #tpu.memory_space<smem>>
    %14 = vector.broadcast %13 : f32 to vector<8xf32>
    %15 = arith.addf %12, %14 : vector<8xf32>
    %16 = vector.shape_cast %15 : vector<8xf32> to vector<1x8xf32>
    %c0_10 = arith.constant 0 : index
    %c0_11 = arith.constant 0 : index
    %17 = vector.load %arg6[%c0_10, %c0_11] : memref<1x8xf32, #tpu.memory_space<vmem>>, vector<1x8xf32>
    tpu.vector_store %arg6[%c0_10, %c0_11], %16 {strides = array<i32>} : memref<1x8xf32, #tpu.memory_space<vmem>>, vector<1x8xf32>,
    return
  }
  func.func @transform_0(%arg0: i32) -> (i32, i32) {
    %c0_i32 = arith.constant 0 : i32
    %c0_i32_0 = arith.constant 0 : i32
    return %arg0, %c0_i32 : i32, i32
  }
  func.func @transform_1(%arg0: i32) -> (i32, i32) {
    %c0_i32 = arith.constant 0 : i32
    %c0_i32_0 = arith.constant 0 : i32
    %c0_i32_1 = arith.constant 0 : i32
    return %c0_i32, %c0_i32_0 : i32, i32
  }
  func.func @transform_2(%arg0: i32) -> (i32, i32) {
    %c0_i32 = arith.constant 0 : i32
    %c0_i32_0 = arith.constant 0 : i32
    %c0_i32_1 = arith.constant 0 : i32
    return %c0_i32, %c0_i32_0 : i32, i32
  }
  func.func @transform_3(%arg0: i32) -> (i32, i32) {
    %c0_i32 = arith.constant 0 : i32
    %c0_i32_0 = arith.constant 0 : i32
    %c0_i32_1 = arith.constant 0 : i32
    return %c0_i32, %c0_i32_0 : i32, i32
  }
  func.func @transform_4(%arg0: i32) -> i32 {
    %c0_i32 = arith.constant 0 : i32
    %c0_i32_0 = arith.constant 0 : i32
    return %c0_i32 : i32
  }
  func.func @transform_5(%arg0: i32) -> (i32, i32) {
    %c0_i32 = arith.constant 0 : i32
    %c0_i32_0 = arith.constant 0 : i32
    return %c0_i32, %arg0 : i32, i32
  }
}

</mosaic_0001>

<llo_original>
// kernel: tpu_custom_call.1
$region0: #{tpu_custom_call.1}
  #allocation0 [shape = 'u32[]', space=smem, size = 0x4, offset = 0x4, fixed_abs, tag = 'smem constant byte address 0x4 - core index']
  #allocation1 [shape = 'u32[144,128]{1,0:T(1,128)}', space=vmem, size = 0x12000, scoped, tag = 'internal scratch']
  #allocation2 [shape = 'f32[1]{0:T(128)S(6)}', space=smem, size = 0x200, scoped, tag = 'scoped memory for tpu_custom_call.1']
  %s0 = inlined_call_operand.hbm [shape: f32[8,32], index: 0, kind: input, shape index: {}]
  %s1 = inlined_call_operand.hbm [shape: bf16[32,128], index: 1, kind: input, shape index: {}]
  %s2 = inlined_call_operand.vmem [shape: f32[1,128], index: 2, kind: input, shape index: {}]
  %s3 = inlined_call_operand.vmem [shape: f32[1,128], index: 3, kind: input, shape index: {}]
  %s4 = inlined_call_operand.<no memory space> [shape: f32[1], index: 4, kind: input, shape index: {}]
  %s5 = inlined_call_operand.hbm [shape: f32[1,8], index: 5, kind: output, shape index: {}]
  %s6 = sld [smem:[#allocation0]]
  $region38: #{tpu_custom_call.1} parent=0
    _
  %s8 = ssub.s32 1, %s6
  %s9 = scalar_select 0, %s8, %s6
  %10 = sst [smem:[#allocation2]] %s4
  $region1: #{tpu_custom_call.1} parent=0
    #allocation3 [shape = 'u8[4096]{0}', space=vmem, size = 0x1000, scoped, tag = 'input window, operand 0, single buffered']
    #allocation4 [shape = 's32[1]{0}', space=sflag, size = 0x4, scoped, tag = 'scoped memory for tpu_custom_call.1']
    #allocation5 [shape = 's32[1]{0}', space=sflag, size = 0x4, scoped, tag = 'scoped memory for tpu_custom_call.1']
    #allocation6 [shape = 'u8[8192]{0}', space=vmem, size = 0x2000, scoped, tag = 'input window, operand 1, single buffered']
    #allocation7 [shape = 's32[1]{0}', space=sflag, size = 0x4, scoped, tag = 'scoped memory for tpu_custom_call.1']
    #allocation8 [shape = 'u8[512]{0}', space=vmem, size = 0x400, scoped, tag = 'output window, operand 0, single buffered']
    %11 = vsyncpa [#allocation4], 0
    %12 = vsyncpa [#allocation7], 0
    %13 = vsyncpa [#allocation5], 0
    // Predicated region
    $region2: #{tpu_custom_call.1} parent=1 // pred_check
      _
    $region3: #{tpu_custom_call.1} parent=1 // pred_check_branch
      %15 = sbr.rel (0) target = $region5
    $region4: #{tpu_custom_call.1} parent=1 // pred_region
      %s17 = ssub.s32 128, 128
      %18 = vsyncadd [#allocation4], %s17
      %s20 = sshll.u32 [#allocation3], 4
      %s21 = int_to_ptr.vmem [resolvable:$true] %s20
      %23 = dma.hbm_to_vmem [thread:$0]  %s0, 128, %s21, [#allocation4]
    $region5: #{tpu_custom_call.1} parent=1 // pred_fallthru
      _
    // Predicated region
    $region6: #{tpu_custom_call.1} parent=1 // pred_check
      _
    $region7: #{tpu_custom_call.1} parent=1 // pred_check_branch
      %25 = sbr.rel (0) target = $region9
    $region8: #{tpu_custom_call.1} parent=1 // pred_region
      %s27 = ssub.s32 256, 256
      %28 = vsyncadd [#allocation7], %s27
      %s29 = sshll.u32 [#allocation6], 4
      %s30 = int_to_ptr.vmem [resolvable:$true] %s29
      %35 = dma.hbm_to_vmem [thread:$0]  %s1, 256, %s30, [#allocation7], 64, 64, 4
    $region9: #{tpu_custom_call.1} parent=1 // pred_fallthru
      _
    // Predicated region
    $region10: #{tpu_custom_call.1} parent=1 // pred_check
      _
    $region11: #{tpu_custom_call.1} parent=1 // pred_check_branch
      %37 = sbr.rel (0) target = $region13
    $region12: #{tpu_custom_call.1} parent=1 // pred_region
      _
    $region13: #{tpu_custom_call.1} parent=1 // pred_fallthru
      _
    // Predicated region
    $region14: #{tpu_custom_call.1} parent=1 // pred_check
      _
    $region15: #{tpu_custom_call.1} parent=1 // pred_check_branch
      %39 = sbr.rel (0) target = $region17
    $region16: #{tpu_custom_call.1} parent=1 // pred_region
      _
    $region17: #{tpu_custom_call.1} parent=1 // pred_fallthru
      _
    // Predicated region
    $region18: #{tpu_custom_call.1} parent=1 // pred_check
      _
    $region19: #{tpu_custom_call.1} parent=1 // pred_check_branch
      %41 = sbr.rel (0) target = $region21
    $region20: #{tpu_custom_call.1} parent=1 // pred_region
      _
    $region21: #{tpu_custom_call.1} parent=1 // pred_fallthru
      _
    // Predicated region
    $region22: #{tpu_custom_call.1} parent=1 // pred_check
      _
    $region23: #{tpu_custom_call.1} parent=1 // pred_check_branch
      %43 = sbr.rel (0) target = $region25
    $region24: #{tpu_custom_call.1} parent=1 // pred_region
      %44 = dma.done [#allocation4], 128
    $region25: #{tpu_custom_call.1} parent=1 // pred_fallthru
      _
    // Predicated region
    $region26: #{tpu_custom_call.1} parent=1 // pred_check
      _
    $region27: #{tpu_custom_call.1} parent=1 // pred_check_branch
      %46 = sbr.rel (0) target = $region29
    $region28: #{tpu_custom_call.1} parent=1 // pred_region
      %47 = dma.done [#allocation7], 256
    $region29: #{tpu_custom_call.1} parent=1 // pred_fallthru
      _
    %v49 = vld [vmem:[#allocation3] sm:$0xff]
    %v50 = vpack.c.bf16 %v49, %v49
    %v51 = vld [vmem:[#allocation6] sm:$0xf]
    %v52 = vld [vmem:[#allocation6 + $0x4] sm:$0xf]
    %v53 = vld [vmem:[#allocation6 + $0x8] sm:$0xf]
    %v54 = vld [vmem:[#allocation6 + $0xc] sm:$0xf]
    %v55 = vld [vmem:[%s2] sm:$0x1]
    %v57 = vlaneseq
    %v58 = vshrl.u32 %v57, 7
    %v59 = vsub.s32 0, %v58
    %v60 = vrot.slane %v55, %v59
    %v66 = vunpack.c.l.b16 %v51
    %v67 = vunpack.c.l.b16 %v52
    %v68 = vunpack.c.l.b16 %v53
    %v69 = vunpack.c.l.b16 %v54
    %v70 = vpack.c.b16 %v67, %v66
    %v71 = vpack.c.b16 %v69, %v68
    %vm74 = vcmask 261120
    %v76 = vsel %vm74, %v50, 0
    %78 = vmatprep.subr.bf16.mxu0 0
    %79 = vmatpush1.bf16.msra.mxu0 %v70
    %80 = vmatprep.subr.bf16.mxu0 0
    %81 = vmatpush1.bf16.msra.mxu0 %v71
    %82 = vmatprep.subr.bf16.mxu0 0
    %83 = vmatpush1.bf16.msra.mxu0 0
    %84 = vmatprep.subr.bf16.mxu0 0
    %85 = vmatpush1.bf16.msra.mxu0 0
    %86 = vmatprep.subr.bf16.mxu0 0
    %87 = vmatpush1.bf16.msra.mxu0 0
    %88 = vmatprep.subr.bf16.mxu0 0
    %89 = vmatpush1.bf16.msra.mxu0 0
    %90 = vmatprep.subr.bf16.mxu0 0
    %91 = vmatpush1.bf16.msra.mxu0 0
    %92 = vmatprep.subr.bf16.mxu0 0
    %93 = vmatpush1.bf16.msra.mxu0 0
    %94 = vmatprep.subr.bf16.mxu0 0
    %95 = vmatpush1.bf16.msra.mxu0 0
    %96 = vmatprep.subr.bf16.mxu0 0
    %97 = vmatpush1.bf16.msra.mxu0 0
    %98 = vmatprep.subr.bf16.mxu0 0
    %99 = vmatpush1.bf16.msra.mxu0 0
    %100 = vmatprep.subr.bf16.mxu0 0
    %101 = vmatpush1.bf16.msra.mxu0 0
    %102 = vmatprep.subr.bf16.mxu0 0
    %103 = vmatpush1.bf16.msra.mxu0 0
    %104 = vmatprep.subr.bf16.mxu0 0
    %105 = vmatpush1.bf16.msra.mxu0 0
    %106 = vmatprep.subr.bf16.mxu0 0
    %107 = vmatpush1.bf16.msra.mxu0 0
    %108 = vmatprep.subr.bf16.mxu0 0
    %109 = vmatpush1.bf16.msra.mxu0 0
    %110 = vmatprep.mubr.bf16.mxu0 0
    %111 = vmatmul.mubr.bf16.gmra.mrb[0].mxu0 %v76
    %v112 = vpop.f32.mrb[0].mxu0
    %v113 = vadd.f32 %v60, %v112
    %v114 = vpop.f32.mrb[0].mxu0
    %v115 = vpop.f32.mrb[0].mxu0
    %v116 = vpop.f32.mrb[0].mxu0
    %117 = vdwg.mxu0
    %v118 = vmax.f32 %v113, 0.0
    %v119 = vld [vmem:[%s3] sm:$0x1]
    %v121 = vlaneseq
    %v122 = vshrl.u32 %v121, 7
    %v123 = vsub.s32 0, %v122
    %v124 = vrot.slane %v119, %v123
    %v126 = vmul.f32 %v118, %v124
    %127 = vadd.xlane.f32.xlu0 %v126
    %v128 = vpop.xlane.xlu0 %127
    %s129 = sld [smem:[#allocation2]]
    %v130 = vstv %s129
    %v131 = vadd.f32 %v128, %v130
    %v133 = vlaneseq
    %v134 = vand.u32 %v133, 127
    %v135 = vlaneseq
    %v136 = vshrl.u32 %v135, 7
    %v137 = vsub.s32 %v134, %v136
    %v138 = vrot.slane %v131, %v137
    %vm140 = vcmask 57344
    %141 = vst.msk [vmem:[#allocation8] sm:$0x1] %vm140, %v138
    // Predicated region
    $region30: #{tpu_custom_call.1} parent=1 // pred_check
      _
    $region31: #{tpu_custom_call.1} parent=1 // pred_check_branch
      %143 = sbr.rel (0) target = $region33
    $region32: #{tpu_custom_call.1} parent=1 // pred_region
      %s145 = ssub.s32 16, 16
      %146 = vsyncadd [#allocation5], %s145
      %s148 = sshll.u32 [#allocation8], 4
      %s149 = int_to_ptr.vmem [resolvable:$true] %s148
      %151 = dma.vmem_to_hbm [thread:$0]  %s149, 16, %s5, [#allocation5]
    $region33: #{tpu_custom_call.1} parent=1 // pred_fallthru
      _
    // Predicated region
    $region34: #{tpu_custom_call.1} parent=1 // pred_check
      _
    $region35: #{tpu_custom_call.1} parent=1 // pred_check_branch
      %153 = sbr.rel (0) target = $region37
    $region36: #{tpu_custom_call.1} parent=1 // pred_region
      %154 = dma.done [#allocation5], 16
    $region37: #{tpu_custom_call.1} parent=1 // pred_fallthru
      _
    %155 = vsyncpa [#allocation4], 1
    %156 = vsyncpa [#allocation7], 1
    %157 = vsyncpa [#allocation5], 1

</llo_original>
